<compile_context>
chip_gen: v5e
topology: v5e:2x2
jax: 0.10.0
libtpu: 0.0.40
codegen_flags: <defaults>
</compile_context>

<pallas_src>
import functools
import math

import jax
import jax.numpy as jnp
from jax import lax
from jax.experimental import pallas as pl
from jax.experimental.pallas import tpu as pltpu


def _round_up(a, b):
    return (a + b - 1) // b * b


def _downsample_kernel(x_ref, w_ref, b_ref, o_ref, *, eps, inv_d):
    # x: (TM, D)   w: (D, Dout) = gamma-folded weight   b: (1, Dout) = beta @ W   o: (TM, Dout)
    x = x_ref[...].astype(jnp.float32)

    # One-pass LayerNorm statistics (biased variance, matches nn.LayerNorm).
    s = jnp.sum(x, axis=-1, keepdims=True)
    sq = jnp.sum(x * x, axis=-1, keepdims=True)
    mean = s * inv_d
    var = jnp.maximum(sq * inv_d - mean * mean, 0.0)
    inv = lax.rsqrt(var + jnp.float32(eps))
    xn = (x - mean) * inv                      # LN affine is folded into w/b at trace time

    # Linear (gamma folded in, bias = beta @ W): feed the MXU in the weight's native dtype
    # (bf16 fast path when the caller passes bf16 weights), accumulate in f32.
    o = jnp.dot(xn.astype(w_ref.dtype), w_ref[...],
                preferred_element_type=jnp.float32)
    o_ref[...] = (o + b_ref[...].astype(jnp.float32)).astype(o_ref.dtype)


def downsample_pallas(x, gamma, beta, w, input_resolution, output_resolution,
                      *, eps=1e-5, tm=1024, vmem_budget_bytes=32 * 1024 * 1024):
    """x: (B, N, C) with N = in_pl*in_lat*in_lon.  w: (4C, 2C) (= PyTorch weight.T)."""
    B, N, C = x.shape
    in_pl, in_lat, in_lon = input_resolution
    out_pl, out_lat, out_lon = output_resolution
    assert N == in_pl * in_lat * in_lon
    assert in_pl == out_pl

    # ---- patch merging (layout plumbing, done once in the wrapper) ----
    h_pad = out_lat * 2 - in_lat
    w_pad = out_lon * 2 - in_lon
    pad_top, pad_left = h_pad // 2, w_pad // 2
    pad_bottom, pad_right = h_pad - pad_top, w_pad - pad_left

    x5 = x.reshape(B, in_pl, in_lat, in_lon, C)
    x5 = jnp.pad(x5, ((0, 0), (0, 0), (pad_top, pad_bottom),
                      (pad_left, pad_right), (0, 0)))
    x7 = x5.reshape(B, in_pl, out_lat, 2, out_lon, 2, C)
    x7 = jnp.transpose(x7, (0, 1, 2, 4, 3, 5, 6))
    x2d = x7.reshape(B * out_pl * out_lat * out_lon, 4 * C)

    M, D = x2d.shape
    Dout = w.shape[1]
    out_dtype = x.dtype

    # ---- fold the LayerNorm affine into the linear (trace time, f32 math) ----
    #   (xhat*gamma + beta) @ W  ==  xhat @ (gamma[:,None]*W)  +  beta @ W
    w_f32 = w.astype(jnp.float32)
    w_fold = (gamma.astype(jnp.float32)[:, None] * w_f32).astype(w.dtype)
    b_fold = (beta.astype(jnp.float32) @ w_f32).reshape(1, Dout)   # kept in f32 (tiny)

    # ---- row tiling ----
    x_isz = jnp.dtype(x.dtype).itemsize
    w_isz = jnp.dtype(w_fold.dtype).itemsize
    o_isz = jnp.dtype(out_dtype).itemsize
    sublane = max(8, 32 // x_isz)      # 8 (f32), 16 (bf16), 32 (int8/fp8) sublane packing

    # Large tiles amortize per-grid-step overhead; keep >=2 tiles so the "parallel"
    # axis can shard across both TensorCores on v7x.
    tm = max(sublane, min(tm, _round_up(pl.cdiv(M, 2), sublane)))

    # Cap the tile so double-buffered x/out + single-buffered weight fit a VMEM budget
    # that is safe on every generation (we raise the scoped limit explicitly below).
    def _vmem_bytes(t):
        return (2 * t * D * x_isz          # x, double-buffered
                + 2 * t * Dout * o_isz     # out, double-buffered
                + D * Dout * w_isz         # weight, single-buffered (Buffered(1))
                + Dout * 4)                # folded bias
    while tm > sublane and _vmem_bytes(tm) > vmem_budget_bytes:
        tm = max(sublane, _round_up(tm // 2, sublane))

    m_pad = _round_up(M, tm)
    if m_pad != M:
        x2d = jnp.pad(x2d, ((0, m_pad - M), (0, 0)))
    n_tiles = m_pad // tm

    cost = pl.CostEstimate(
        flops=2 * m_pad * D * Dout,
        transcendentals=m_pad,             # one rsqrt per row
        bytes_accessed=(m_pad * D * x_isz + D * Dout * w_isz
                        + Dout * 4 + m_pad * Dout * o_isz),
    )

    out2d = pl.pallas_call(
        functools.partial(_downsample_kernel, eps=eps, inv_d=1.0 / D),
        out_shape=jax.ShapeDtypeStruct((m_pad, Dout), out_dtype),
        grid=(n_tiles,),
        in_specs=[
            pl.BlockSpec((tm, D), lambda i: (i, 0)),                 # x rows: streamed
            pl.BlockSpec((D, Dout), lambda i: (0, 0),
                         pipeline_mode=pl.Buffered(1)),              # weight: resident
            pl.BlockSpec((1, Dout), lambda i: (0, 0),
                         pipeline_mode=pl.Buffered(1)),              # folded bias: resident
        ],
        out_specs=pl.BlockSpec((tm, Dout), lambda i: (i, 0)),
        compiler_params=pltpu.CompilerParams(
            dimension_semantics=("parallel",),
            # Above any generation's scoped default (v5e 16 MiB), below v7x physical 64 MiB.
            vmem_limit_bytes=48 * 1024 * 1024,
        ),
        cost_estimate=cost,
    )(x2d, w_fold, b_fold)

    out2d = out2d[:M]
    return out2d.reshape(B, out_pl * out_lat * out_lon, Dout)


def downsample_ref(x, gamma, beta, w, input_resolution, output_resolution, eps=1e-5):
    """Pure-JAX reference mirroring the PyTorch forward."""
    B, N, C = x.shape
    in_pl, in_lat, in_lon = input_resolution
    out_pl, out_lat, out_lon = output_resolution
    h_pad = out_lat * 2 - in_lat
    w_pad = out_lon * 2 - in_lon
    pad_top, pad_left = h_pad // 2, w_pad // 2
    pad_bottom, pad_right = h_pad - pad_top, w_pad - pad_left
    x5 = x.reshape(B, in_pl, in_lat, in_lon, C)
    x5 = jnp.pad(x5, ((0, 0), (0, 0), (pad_top, pad_bottom),
                      (pad_left, pad_right), (0, 0)))
    x7 = x5.reshape(B, in_pl, out_lat, 2, out_lon, 2, C)
    x7 = jnp.transpose(x7, (0, 1, 2, 4, 3, 5, 6))
    x2d = x7.reshape(B * out_pl * out_lat * out_lon, 4 * C)
    mean = x2d.mean(-1, keepdims=True)
    var = ((x2d - mean) ** 2).mean(-1, keepdims=True)
    h = (x2d - mean) / jnp.sqrt(var + eps) * gamma + beta
    out = h @ w
    return out.reshape(B, out_pl * out_lat * out_lon, w.shape[1])


if __name__ == "__main__":
    key = jax.random.PRNGKey(0)
    kx, kg, kb, kw = jax.random.split(key, 4)

    in_dim = 64                          # C  -> 4C = 256, 2C = 128 (lane-dense)
    input_resolution = (2, 9, 17)        # (pl, lat, lon)
    output_resolution = (2, 5, 9)        # pads lat 9->10, lon 17->18, then 2x2 merge
    B = 2
    N = input_resolution[0] * input_resolution[1] * input_resolution[2]   # 306

    d_in, d_out = 4 * in_dim, 2 * in_dim
    x = jax.random.normal(kx, (B, N, in_dim), dtype=jnp.float32)
    # Non-trivial LayerNorm affine so the fold-into-weight path is actually exercised.
    gamma = 1.0 + 0.1 * jax.random.normal(kg, (d_in,), jnp.float32)
    beta = 0.1 * jax.random.normal(kb, (d_in,), jnp.float32)
    lim = 1.0 / math.sqrt(d_in)
    w = jax.random.uniform(kw, (d_in, d_out), jnp.float32, -lim, lim)   # (4C, 2C) = weight.T

    # f32 path (matches PyTorch defaults)
    out = downsample_pallas(x, gamma, beta, w, input_resolution, output_resolution)
    jax.block_until_ready(out)

    ref = downsample_ref(x, gamma, beta, w, input_resolution, output_resolution)
    M_out = output_resolution[0] * output_resolution[1] * output_resolution[2]
    assert out.shape == (B, M_out, d_out), f"bad shape {out.shape}"
    assert jnp.allclose(out, ref, atol=2e-5, rtol=2e-5), "f32 mismatch vs reference"

    # bf16 fast path: bf16 activations + weights feed the MXU's fast path (f32 accumulation).
    out_bf16 = downsample_pallas(x.astype(jnp.bfloat16), gamma, beta,
                                 w.astype(jnp.bfloat16),
                                 input_resolution, output_resolution)
    jax.block_until_ready(out_bf16)
    assert out_bf16.dtype == jnp.bfloat16
    assert jnp.allclose(out_bf16.astype(jnp.float32), ref, atol=1e-1, rtol=5e-2), \
        "bf16 mismatch vs reference"

    print("KERNEL_OK")
</pallas_src>

<mosaic_0001>
module attributes {stable_mosaic.version = 11 : i64} {
  func.func @_downsample_kernel(%arg0: i32, %arg1: memref<96x256xf32, #tpu.memory_space<vmem>>, %arg2: memref<256x128xf32, #tpu.memory_space<vmem>>, %arg3: memref<1x128xf32, #tpu.memory_space<vmem>>, %arg4: memref<96x128xf32, #tpu.memory_space<vmem>>) attributes {dimension_semantics = [#tpu.dimension_semantics<parallel>], iteration_bounds = array<i64: 2>, scalar_prefetch = 0 : i64, scratch_operands = 0 : i64, tpu.core_type = #tpu.core_type<tc>, window_params = [{transform_indices = @transform_0, window_bounds = array<i64: 96, 256>}, {pipeline_mode = #tpu.pipeline_mode<synchronous>, transform_indices = @transform_1, window_bounds = array<i64: 256, 128>}, {pipeline_mode = #tpu.pipeline_mode<synchronous>, transform_indices = @transform_2, window_bounds = array<i64: 1, 128>}, {transform_indices = @transform_3, window_bounds = array<i64: 96, 128>}]} {
    %c0 = arith.constant 0 : index
    %c0_0 = arith.constant 0 : index
    %0 = vector.load %arg1[%c0, %c0_0] : memref<96x256xf32, #tpu.memory_space<vmem>>, vector<96x256xf32>
    %cst = arith.constant dense<0.000000e+00> : vector<96xf32>
    %1 = vector.multi_reduction <add>, %0, %cst [1] : vector<96x256xf32> to vector<96xf32>
    %2 = vector.shape_cast %1 : vector<96xf32> to vector<96x1xf32>
    %3 = arith.mulf %0, %0 : vector<96x256xf32>
    %cst_1 = arith.constant dense<0.000000e+00> : vector<96xf32>
    %4 = vector.multi_reduction <add>, %3, %cst_1 [1] : vector<96x256xf32> to vector<96xf32>
    %5 = vector.shape_cast %4 : vector<96xf32> to vector<96x1xf32>
    %cst_2 = arith.constant 3.906250e-03 : f32
    %6 = vector.broadcast %cst_2 : f32 to vector<96x1xf32>
    %7 = arith.mulf %2, %6 : vector<96x1xf32>
    %cst_3 = arith.constant 3.906250e-03 : f32
    %8 = vector.broadcast %cst_3 : f32 to vector<96x1xf32>
    %9 = arith.mulf %5, %8 : vector<96x1xf32>
    %10 = arith.mulf %7, %7 : vector<96x1xf32>
    %11 = arith.subf %9, %10 : vector<96x1xf32>
    %cst_4 = arith.constant 0.000000e+00 : f32
    %12 = vector.broadcast %cst_4 : f32 to vector<96x1xf32>
    %13 = arith.maximumf %11, %12 : vector<96x1xf32>
    %cst_5 = arith.constant 9.99999974E-6 : f32
    %14 = vector.broadcast %cst_5 : f32 to vector<96x1xf32>
    %15 = arith.addf %13, %14 : vector<96x1xf32>
    %16 = math.rsqrt %15 : vector<96x1xf32>
    %17 = vector.broadcast %7 : vector<96x1xf32> to vector<96x256xf32>
    %18 = arith.subf %0, %17 : vector<96x256xf32>
    %19 = vector.broadcast %16 : vector<96x1xf32> to vector<96x256xf32>
    %20 = arith.mulf %18, %19 : vector<96x256xf32>
    %c0_6 = arith.constant 0 : index
    %c0_7 = arith.constant 0 : index
    %21 = vector.load %arg2[%c0_6, %c0_7] : memref<256x128xf32, #tpu.memory_space<vmem>>, vector<256x128xf32>
    %cst_8 = arith.constant dense<0.000000e+00> : vector<96x128xf32>
    %22 = tpu.matmul %20, %21, %cst_8 {dimension_numbers = #tpu.dot_dimension_numbers<[1], [0], [0], [1], [0, 0, 1, 1], [], []>} : vector<96x256xf32>, vector<256x128xf32>, vector<96x128xf32> -> vector<96x128xf32>
    %c0_9 = arith.constant 0 : index
    %c0_10 = arith.constant 0 : index
    %23 = vector.load %arg3[%c0_9, %c0_10] : memref<1x128xf32, #tpu.memory_space<vmem>>, vector<1x128xf32>
    %24 = vector.broadcast %23 : vector<1x128xf32> to vector<96x128xf32>
    %25 = arith.addf %22, %24 : vector<96x128xf32>
    %c0_11 = arith.constant 0 : index
    %c0_12 = arith.constant 0 : index
    %26 = vector.load %arg4[%c0_11, %c0_12] : memref<96x128xf32, #tpu.memory_space<vmem>>, vector<96x128xf32>
    tpu.vector_store %arg4[%c0_11, %c0_12], %25 {strides = array<i32>} : memref<96x128xf32, #tpu.memory_space<vmem>>, vector<96x128xf32>,
    return
  }
  func.func @transform_0(%arg0: i32) -> (i32, i32) {
    %c0_i32 = arith.constant 0 : i32
    %c0_i32_0 = arith.constant 0 : i32
    return %arg0, %c0_i32 : i32, i32
  }
  func.func @transform_1(%arg0: i32) -> (i32, i32) {
    %c0_i32 = arith.constant 0 : i32
    %c0_i32_0 = arith.constant 0 : i32
    %c0_i32_1 = arith.constant 0 : i32
    return %c0_i32, %c0_i32_0 : i32, i32
  }
  func.func @transform_2(%arg0: i32) -> (i32, i32) {
    %c0_i32 = arith.constant 0 : i32
    %c0_i32_0 = arith.constant 0 : i32
    %c0_i32_1 = arith.constant 0 : i32
    return %c0_i32, %c0_i32_0 : i32, i32
  }
  func.func @transform_3(%arg0: i32) -> (i32, i32) {
    %c0_i32 = arith.constant 0 : i32
    %c0_i32_0 = arith.constant 0 : i32
    return %arg0, %c0_i32 : i32, i32
  }
}

</mosaic_0001>

<llo_original>
// kernel: tpu_custom_call.1
$region0: #{tpu_custom_call.1}
  #allocation0 [shape = 'u32[]', space=smem, size = 0x4, offset = 0x4, fixed_abs, tag = 'smem constant byte address 0x4 - core index']
  #allocation1 [shape = 'u32[72,128]{1,0:T(1,128)}', space=vmem, size = 0x9000, scoped, tag = 'internal scratch']
  %s0 = inlined_call_operand.hbm [shape: f32[192,256], index: 0, kind: input, shape index: {}]
  %s1 = inlined_call_operand.hbm [shape: f32[256,128], index: 1, kind: input, shape index: {}]
  %s2 = inlined_call_operand.vmem [shape: f32[1,128], index: 2, kind: input, shape index: {}]
  %s3 = inlined_call_operand.hbm [shape: f32[192,128], index: 3, kind: output, shape index: {}]
  %s4 = sld [smem:[#allocation0]]
  $region53: #{tpu_custom_call.1} parent=0
    _
  %s6 = ssub.s32 1, %s4
  %s7 = scalar_select 0, %s6, %s4
  $region1: #{tpu_custom_call.1} parent=0
    #allocation2 [shape = 'u8[196608]{0}', space=vmem, size = 0x30000, scoped, tag = 'input window, operand 0']
    #allocation3 [shape = 's32[2]{0}', space=sflag, size = 0x8, scoped, tag = 'scoped memory for tpu_custom_call.1']
    #allocation4 [shape = 's32[2]{0}', space=sflag, size = 0x8, scoped, tag = 'scoped memory for tpu_custom_call.1']
    #allocation5 [shape = 'u8[131072]{0}', space=vmem, size = 0x20000, scoped, tag = 'input window, operand 1, single buffered']
    #allocation6 [shape = 's32[1]{0}', space=sflag, size = 0x4, scoped, tag = 'scoped memory for tpu_custom_call.1']
    #allocation7 [shape = 'u8[98304]{0}', space=vmem, size = 0x18000, scoped, tag = 'output window, operand 0']
    %8 = vsyncpa [#allocation3], 0
    %s9 = scalar_lea.sflag [#allocation3], 1
    %10 = vsyncpa %s9, 0
    %11 = vsyncpa [#allocation6], 0
    %12 = vsyncpa [#allocation4], 0
    %s13 = scalar_lea.sflag [#allocation4], 1
    %14 = vsyncpa %s13, 0
    loop: start=0, step=1, limit=4
    $region2: #{tpu_custom_call.1} parent=1 // loop_pre_header
      _
    $region3: #{tpu_custom_call.1} parent=1 // loop_header
      %s16 = sphi 0, %s20
      %p17 = scmp.ge.s32.totalorder %s16, 4
      %s26 = sphi 0, %s28
      %s29 = sphi 0, %s26
      %s30 = sphi 0, %s29
      %s46 = sphi 0, %s30
      %s50 = sphi 0, %s50
      %s52 = sphi 0, %s50
      %s53 = sphi 0, %s52
      %s67 = sphi 0, %s53
      %s71 = sphi 0, %s71
      %s73 = sphi 0, %s71
      %s74 = sphi 0, %s73
      %s88 = sphi 0, %s74
      %s94 = sphi 0, %s96
      %s97 = sphi 0, %s94
      %s98 = sphi 0, %s97
      %s114 = sphi 0, %s98
    $region4: #{tpu_custom_call.1} parent=1 // loop_header_branch
      %19 = sbr.rel (%p17) target = $region8
    $region5: #{tpu_custom_call.1} parent=1 // loop_body
      %s21 = ssub.s32 %s16, 1
      %s22 = ssub.s32 %s16, 2
      %s23 = sadd.s32 %s16, 1
      %s24 = ssub.s32 %s16, %s23
      %p25 = scmp.eq.s32.totalorder %s24, 0
      %s27 = sadd.s32 %s26, 1
      %s28 = scalar_select %p25, %s26, %s27
      %p31 = pneg %p25
      %p32 = scmp.eq.s32.totalorder %s16, 1
      %p33 = por %p31, %p32
      %p34 = scmp.ne.s32.totalorder %s26, %s29
      %p35 = scmp.eq.s32.totalorder %s16, 0
      %p36 = por %p34, %p35
      %p37 = scmp.ne.s32.totalorder %s26, %s29
      %p38 = scmp.eq.s32.totalorder %s21, 1
      %p39 = por %p37, %p38
      %p40 = scmp.ne.s32.totalorder %s29, %s30
      %p41 = scmp.eq.s32.totalorder %s21, 0
      %p42 = por %p40, %p41
      %p43 = scmp.ne.s32.totalorder %s29, %s30
      %p44 = scmp.eq.s32.totalorder %s22, 1
      %p45 = por %p43, %p44
      %p47 = scmp.ne.s32.totalorder %s30, %s46
      %p48 = scmp.eq.s32.totalorder %s22, 0
      %p49 = por %p47, %p48
      %s51 = sadd.s32 %s50, 1
      %p54 = scmp.eq.s32.totalorder %s16, 1
      %p55 = scmp.ne.s32.totalorder %s50, %s52
      %p56 = scmp.eq.s32.totalorder %s16, 0
      %p57 = por %p55, %p56
      %p58 = scmp.ne.s32.totalorder %s50, %s52
      %p59 = scmp.eq.s32.totalorder %s21, 1
      %p60 = por %p58, %p59
      %p61 = scmp.ne.s32.totalorder %s52, %s53
      %p62 = scmp.eq.s32.totalorder %s21, 0
      %p63 = por %p61, %p62
      %p64 = scmp.ne.s32.totalorder %s52, %s53
      %p65 = scmp.eq.s32.totalorder %s22, 1
      %p66 = por %p64, %p65
      %p68 = scmp.ne.s32.totalorder %s53, %s67
      %p69 = scmp.eq.s32.totalorder %s22, 0
      %p70 = por %p68, %p69
      %s72 = sadd.s32 %s71, 1
      %p75 = scmp.eq.s32.totalorder %s16, 1
      %p76 = scmp.ne.s32.totalorder %s71, %s73
      %p77 = scmp.eq.s32.totalorder %s16, 0
      %p78 = por %p76, %p77
      %p79 = scmp.ne.s32.totalorder %s71, %s73
      %p80 = scmp.eq.s32.totalorder %s21, 1
      %p81 = por %p79, %p80
      %p82 = scmp.ne.s32.totalorder %s73, %s74
      %p83 = scmp.eq.s32.totalorder %s21, 0
      %p84 = por %p82, %p83
      %p85 = scmp.ne.s32.totalorder %s73, %s74
      %p86 = scmp.eq.s32.totalorder %s22, 1
      %p87 = por %p85, %p86
      %p89 = scmp.ne.s32.totalorder %s74, %s88
      %p90 = scmp.eq.s32.totalorder %s22, 0
      %p91 = por %p89, %p90
      %s92 = ssub.s32 %s16, %s23
      %p93 = scmp.eq.s32.totalorder %s92, 0
      %s95 = sadd.s32 %s94, 1
      %s96 = scalar_select %p93, %s94, %s95
      %p99 = pneg %p93
      %p100 = scmp.eq.s32.totalorder %s16, 1
      %p101 = por %p99, %p100
      %p102 = scmp.ne.s32.totalorder %s94, %s97
      %p103 = scmp.eq.s32.totalorder %s16, 0
      %p104 = por %p102, %p103
      %p105 = scmp.ne.s32.totalorder %s94, %s97
      %p106 = scmp.eq.s32.totalorder %s21, 1
      %p107 = por %p105, %p106
      %p108 = scmp.ne.s32.totalorder %s97, %s98
      %p109 = scmp.eq.s32.totalorder %s21, 0
      %p110 = por %p108, %p109
      %p111 = scmp.ne.s32.totalorder %s97, %s98
      %p112 = scmp.eq.s32.totalorder %s22, 1
      %p113 = por %p111, %p112
      %p115 = scmp.ne.s32.totalorder %s98, %s114
      %p116 = scmp.eq.s32.totalorder %s22, 0
      %p117 = por %p115, %p116
      %p118 = scmp.le.s32.totalorder 1, %s16
      %p119 = scmp.lt.s32.totalorder %s16, 3
      %p120 = pnand %p118, %p119
      %p121 = pneg %p120
      // Predicated region
      $region9: #{tpu_custom_call.1} parent=5 // pred_check
        _
      $region10: #{tpu_custom_call.1} parent=5 // pred_check_branch
        %123 = sbr.rel (%p120) target = $region12
      $region11: #{tpu_custom_call.1} parent=5 // pred_region
        %s124 = ssub.s32 %s16, 1
        // Predicated region
        $region13: #{tpu_custom_call.1} parent=11 // pred_check
          %p125 = pneg %p63
        $region14: #{tpu_custom_call.1} parent=11 // pred_check_branch
          %127 = sbr.rel (%p125) target = $region16
        $region15: #{tpu_custom_call.1} parent=11 // pred_region
          %129 = vsyncadd [#allocation6], 0
          %s130 = sshll.u32 %s1, 4
          %s131 = int_to_ptr.hbm [resolvable:$true] %s130
          %s132 = sshll.u32 [#allocation5], 4
          %s133 = int_to_ptr.vmem [resolvable:$true] %s132
          %138 = dma.hbm_to_vmem [thread:$0]  %s131, 4096, %s133, [#allocation6], 128, 128, 8
        $region16: #{tpu_custom_call.1} parent=11 // pred_fallthru
          _
        // Predicated region
        $region17: #{tpu_custom_call.1} parent=11 // pred_check
          %p139 = pneg %p84
        $region18: #{tpu_custom_call.1} parent=11 // pred_check_branch
          %141 = sbr.rel (%p139) target = $region20
        $region19: #{tpu_custom_call.1} parent=11 // pred_region
          _
        $region20: #{tpu_custom_call.1} parent=11 // pred_fallthru
          _
      $region12: #{tpu_custom_call.1} parent=5 // pred_fallthru
        _
      %p142 = scmp.lt.s32.totalorder %s16, 2
      // Predicated region
      $region21: #{tpu_custom_call.1} parent=5 // pred_check
        %p143 = pneg %p142
      $region22: #{tpu_custom_call.1} parent=5 // pred_check_branch
        %145 = sbr.rel (%p143) target = $region24
      $region23: #{tpu_custom_call.1} parent=5 // pred_region
        // Predicated region
        $region25: #{tpu_custom_call.1} parent=23 // pred_check
          %p146 = pneg %p36
        $region26: #{tpu_custom_call.1} parent=23 // pred_check_branch
          %148 = sbr.rel (%p146) target = $region28
        $region27: #{tpu_custom_call.1} parent=23 // pred_region
          %s149 = sand.u32 %s26, 1
          %s150 = scalar_lea.sflag [#allocation3], %s149
          %s151 = sand.u32 %s26, 1
          %s152 = smul.addr %s151, 192
          %s153 = scalar_lea.vmem [#allocation2], %s152
          %s154 = smul.u32 12, %s16
          %156 = vsyncadd %s150, 0
          %s157 = smul.addr %s154, 2
          %s158 = smul.addr %s157, 8
          %s159 = scalar_lea.hbm %s0, %s158
          %s160 = sshll.u32 %s159, 4
          %s161 = int_to_ptr.hbm [resolvable:$true] %s160
          %s162 = sshll.u32 %s153, 4
          %s163 = int_to_ptr.vmem [resolvable:$true] %s162
          %168 = dma.hbm_to_vmem [thread:$0]  %s161, 3072, %s163, %s150, 256, 256, 16
        $region28: #{tpu_custom_call.1} parent=23 // pred_fallthru
          _
      $region24: #{tpu_custom_call.1} parent=5 // pred_fallthru
        _
      %p169 = scmp.le.s32.totalorder 1, %s16
      %p170 = scmp.lt.s32.totalorder %s16, 3
      %p171 = pnand %p169, %p170
      %p172 = pneg %p171
      // Predicated region
      $region29: #{tpu_custom_call.1} parent=5 // pred_check
        _
      $region30: #{tpu_custom_call.1} parent=5 // pred_check_branch
        %174 = sbr.rel (%p171) target = $region32
      $region31: #{tpu_custom_call.1} parent=5 // pred_region
        %s175 = ssub.s32 %s16, 1
        %s176 = sand.u32 %s29, 1
        %s177 = scalar_lea.sflag [#allocation3], %s176
        %s178 = sand.u32 %s29, 1
        %s179 = smul.addr %s178, 192
        %s180 = scalar_lea.vmem [#allocation2], %s179
        // Predicated region
        $region33: #{tpu_custom_call.1} parent=31 // pred_check
          %p181 = pneg %p42
        $region34: #{tpu_custom_call.1} parent=31 // pred_check_branch
          %183 = sbr.rel (%p181) target = $region36
        $region35: #{tpu_custom_call.1} parent=31 // pred_region
          %185 = dma.done %s177, 3072
        $region36: #{tpu_custom_call.1} parent=31 // pred_fallthru
          _
        // Predicated region
        $region37: #{tpu_custom_call.1} parent=31 // pred_check
          %p186 = pneg %p63
        $region38: #{tpu_custom_call.1} parent=31 // pred_check_branch
          %188 = sbr.rel (%p186) target = $region40
        $region39: #{tpu_custom_call.1} parent=31 // pred_region
          %190 = dma.done [#allocation6], 4096
        $region40: #{tpu_custom_call.1} parent=31 // pred_fallthru
          _
        %s191 = sand.u32 %s29, 1
        %s192 = scalar_lea.sflag [#allocation3], %s191
        %s193 = sand.u32 %s29, 1
        %s194 = smul.addr %s193, 192
        %s195 = scalar_lea.vmem [#allocation2], %s194
        %p196 = pneg %p42
        %p197 = pneg %p39
        %p198 = pneg %p63
        %p199 = pneg %p60
        %p200 = pneg %p84
        %p201 = pneg %p81
        %p202 = pneg %p110
        %p203 = pneg %p107
        %s204 = sand.u32 %s97, 1
        %s205 = scalar_lea.sflag [#allocation4], %s204
        %s206 = sand.u32 %s97, 1
        %s207 = smul.addr %s206, 96
        %s208 = scalar_lea.vmem [#allocation7], %s207
        %s209 = smul.u32 12, %s21
        %s210 = smul.u32 12, %s21
        %v211 = vld [vmem:[%s180] sm:$0xff]
        %v212 = vld [vmem:[%s180 + $0x8] sm:$0xff]
        %v213 = vld [vmem:[%s180 + $0x10] sm:$0xff]
        %v214 = vld [vmem:[%s180 + $0x18] sm:$0xff]
        %v215 = vld [vmem:[%s180 + $0x20] sm:$0xff]
        %v216 = vld [vmem:[%s180 + $0x28] sm:$0xff]
        %v217 = vld [vmem:[%s180 + $0x30] sm:$0xff]
        %v218 = vld [vmem:[%s180 + $0x38] sm:$0xff]
        %v219 = vld [vmem:[%s180 + $0x40] sm:$0xff]
        %v220 = vld [vmem:[%s180 + $0x48] sm:$0xff]
        %v221 = vld [vmem:[%s180 + $0x50] sm:$0xff]
        %v222 = vld [vmem:[%s180 + $0x58] sm:$0xff]
        %v223 = vld [vmem:[%s180 + $0x60] sm:$0xff]
        %v224 = vld [vmem:[%s180 + $0x68] sm:$0xff]
        %v225 = vld [vmem:[%s180 + $0x70] sm:$0xff]
        %v226 = vld [vmem:[%s180 + $0x78] sm:$0xff]
        %v227 = vld [vmem:[%s180 + $0x80] sm:$0xff]
        %v228 = vld [vmem:[%s180 + $0x88] sm:$0xff]
        %v229 = vld [vmem:[%s180 + $0x90] sm:$0xff]
        %v230 = vld [vmem:[%s180 + $0x98] sm:$0xff]
        %v231 = vld [vmem:[%s180 + $0xa0] sm:$0xff]
        %v232 = vld [vmem:[%s180 + $0xa8] sm:$0xff]
        %v233 = vld [vmem:[%s180 + $0xb0] sm:$0xff]
        %v234 = vld [vmem:[%s180 + $0xb8] sm:$0xff]
        %v235 = vadd.f32 %v211, %v212
        %236 = vadd.xlane.f32.xlu0 %v235
        %v237 = vpop.xlane.xlu0 %236
        %v238 = vadd.f32 %v213, %v214
        %239 = vadd.xlane.f32.xlu0 %v238
        %v240 = vpop.xlane.xlu0 %239
        %v241 = vadd.f32 %v215, %v216
        %242 = vadd.xlane.f32.xlu0 %v241
        %v243 = vpop.xlane.xlu0 %242
        %v244 = vadd.f32 %v217, %v218
        %245 = vadd.xlane.f32.xlu0 %v244
        %v246 = vpop.xlane.xlu0 %245
        %v247 = vadd.f32 %v219, %v220
        %248 = vadd.xlane.f32.xlu0 %v247
        %v249 = vpop.xlane.xlu0 %248
        %v250 = vadd.f32 %v221, %v222
        %251 = vadd.xlane.f32.xlu0 %v250
        %v252 = vpop.xlane.xlu0 %251
        %v253 = vadd.f32 %v223, %v224
        %254 = vadd.xlane.f32.xlu0 %v253
        %v255 = vpop.xlane.xlu0 %254
        %v256 = vadd.f32 %v225, %v226
        %257 = vadd.xlane.f32.xlu0 %v256
        %v258 = vpop.xlane.xlu0 %257
        %v259 = vadd.f32 %v227, %v228
        %260 = vadd.xlane.f32.xlu0 %v259
        %v261 = vpop.xlane.xlu0 %260
        %v262 = vadd.f32 %v229, %v230
        %263 = vadd.xlane.f32.xlu0 %v262
        %v264 = vpop.xlane.xlu0 %263
        %v265 = vadd.f32 %v231, %v232
        %266 = vadd.xlane.f32.xlu0 %v265
        %v267 = vpop.xlane.xlu0 %266
        %v268 = vadd.f32 %v233, %v234
        %269 = vadd.xlane.f32.xlu0 %v268
        %v270 = vpop.xlane.xlu0 %269
        %v271 = vmul.f32 %v211, %v211
        %v272 = vmul.f32 %v212, %v212
        %v273 = vmul.f32 %v213, %v213
        %v274 = vmul.f32 %v214, %v214
        %v275 = vmul.f32 %v215, %v215
        %v276 = vmul.f32 %v216, %v216
        %v277 = vmul.f32 %v217, %v217
        %v278 = vmul.f32 %v218, %v218
        %v279 = vmul.f32 %v219, %v219
        %v280 = vmul.f32 %v220, %v220
        %v281 = vmul.f32 %v221, %v221
        %v282 = vmul.f32 %v222, %v222
        %v283 = vmul.f32 %v223, %v223
        %v284 = vmul.f32 %v224, %v224
        %v285 = vmul.f32 %v225, %v225
        %v286 = vmul.f32 %v226, %v226
        %v287 = vmul.f32 %v227, %v227
        %v288 = vmul.f32 %v228, %v228
        %v289 = vmul.f32 %v229, %v229
        %v290 = vmul.f32 %v230, %v230
        %v291 = vmul.f32 %v231, %v231
        %v292 = vmul.f32 %v232, %v232
        %v293 = vmul.f32 %v233, %v233
        %v294 = vmul.f32 %v234, %v234
        %v295 = vadd.f32 %v271, %v272
        %296 = vadd.xlane.f32.xlu0 %v295
        %v297 = vpop.xlane.xlu0 %296
        %v298 = vadd.f32 %v273, %v274
        %299 = vadd.xlane.f32.xlu0 %v298
        %v300 = vpop.xlane.xlu0 %299
        %v301 = vadd.f32 %v275, %v276
        %302 = vadd.xlane.f32.xlu0 %v301
        %v303 = vpop.xlane.xlu0 %302
        %v304 = vadd.f32 %v277, %v278
        %305 = vadd.xlane.f32.xlu0 %v304
        %v306 = vpop.xlane.xlu0 %305
        %v307 = vadd.f32 %v279, %v280
        %308 = vadd.xlane.f32.xlu0 %v307
        %v309 = vpop.xlane.xlu0 %308
        %v310 = vadd.f32 %v281, %v282
        %311 = vadd.xlane.f32.xlu0 %v310
        %v312 = vpop.xlane.xlu0 %311
        %v313 = vadd.f32 %v283, %v284
        %314 = vadd.xlane.f32.xlu0 %v313
        %v315 = vpop.xlane.xlu0 %314
        %v316 = vadd.f32 %v285, %v286
        %317 = vadd.xlane.f32.xlu0 %v316
        %v318 = vpop.xlane.xlu0 %317
        %v319 = vadd.f32 %v287, %v288
        %320 = vadd.xlane.f32.xlu0 %v319
        %v321 = vpop.xlane.xlu0 %320
        %v322 = vadd.f32 %v289, %v290
        %323 = vadd.xlane.f32.xlu0 %v322
        %v324 = vpop.xlane.xlu0 %323
        %v325 = vadd.f32 %v291, %v292
        %326 = vadd.xlane.f32.xlu0 %v325
        %v327 = vpop.xlane.xlu0 %326
        %v328 = vadd.f32 %v293, %v294
        %329 = vadd.xlane.f32.xlu0 %v328
        %v330 = vpop.xlane.xlu0 %329
        %v331 = vmul.f32 %v237, 0.00390625
        %v332 = vmul.f32 %v240, 0.00390625
        %v333 = vmul.f32 %v243, 0.00390625
        %v334 = vmul.f32 %v246, 0.00390625
        %v335 = vmul.f32 %v249, 0.00390625
        %v336 = vmul.f32 %v252, 0.00390625
        %v337 = vmul.f32 %v255, 0.00390625
        %v338 = vmul.f32 %v258, 0.00390625
        %v339 = vmul.f32 %v261, 0.00390625
        %v340 = vmul.f32 %v264, 0.00390625
        %v341 = vmul.f32 %v267, 0.00390625
        %v342 = vmul.f32 %v270, 0.00390625
        %v343 = vmul.f32 %v297, 0.00390625
        %v344 = vmul.f32 %v300, 0.00390625
        %v345 = vmul.f32 %v303, 0.00390625
        %v346 = vmul.f32 %v306, 0.00390625
        %v347 = vmul.f32 %v309, 0.00390625
        %v348 = vmul.f32 %v312, 0.00390625
        %v349 = vmul.f32 %v315, 0.00390625
        %v350 = vmul.f32 %v318, 0.00390625
        %v351 = vmul.f32 %v321, 0.00390625
        %v352 = vmul.f32 %v324, 0.00390625
        %v353 = vmul.f32 %v327, 0.00390625
        %v354 = vmul.f32 %v330, 0.00390625
        %v355 = vmul.f32 %v331, %v331
        %v356 = vmul.f32 %v332, %v332
        %v357 = vmul.f32 %v333, %v333
        %v358 = vmul.f32 %v334, %v334
        %v359 = vmul.f32 %v335, %v335
        %v360 = vmul.f32 %v336, %v336
        %v361 = vmul.f32 %v337, %v337
        %v362 = vmul.f32 %v338, %v338
        %v363 = vmul.f32 %v339, %v339
        %v364 = vmul.f32 %v340, %v340
        %v365 = vmul.f32 %v341, %v341
        %v366 = vmul.f32 %v342, %v342
        %v367 = vsub.f32 %v343, %v355
        %v368 = vsub.f32 %v344, %v356
        %v369 = vsub.f32 %v345, %v357
        %v370 = vsub.f32 %v346, %v358
        %v371 = vsub.f32 %v347, %v359
        %v372 = vsub.f32 %v348, %v360
        %v373 = vsub.f32 %v349, %v361
        %v374 = vsub.f32 %v350, %v362
        %v375 = vsub.f32 %v351, %v363
        %v376 = vsub.f32 %v352, %v364
        %v377 = vsub.f32 %v353, %v365
        %v378 = vsub.f32 %v354, %v366
        %v379 = vmax.f32 %v367, 0.0
        %v380 = vmax.f32 %v368, 0.0
        %v381 = vmax.f32 %v369, 0.0
        %v382 = vmax.f32 %v370, 0.0
        %v383 = vmax.f32 %v371, 0.0
        %v384 = vmax.f32 %v372, 0.0
        %v385 = vmax.f32 %v373, 0.0
        %v386 = vmax.f32 %v374, 0.0
        %v387 = vmax.f32 %v375, 0.0
        %v388 = vmax.f32 %v376, 0.0
        %v389 = vmax.f32 %v377, 0.0
        %v390 = vmax.f32 %v378, 0.0
        %v391 = vadd.f32 %v379, 1e-05
        %v392 = vadd.f32 %v380, 1e-05
        %v393 = vadd.f32 %v381, 1e-05
        %v394 = vadd.f32 %v382, 1e-05
        %v395 = vadd.f32 %v383, 1e-05
        %v396 = vadd.f32 %v384, 1e-05
        %v397 = vadd.f32 %v385, 1e-05
        %v398 = vadd.f32 %v386, 1e-05
        %v399 = vadd.f32 %v387, 1e-05
        %v400 = vadd.f32 %v388, 1e-05
        %v401 = vadd.f32 %v389, 1e-05
        %v402 = vadd.f32 %v390, 1e-05
        %v403 = vrsqrt.pop %v391
        %v404 = vmul.f32 %v403, %v391
        %v405 = vmul.f32 %v404, %v403
        %v406 = vmul.f32 0.5, %v405
        %v407 = vsub.f32 1.5, %v406
        %v408 = vmul.f32 %v403, %v407
        %vm409 = vweird.f32 %v391
        %vm410 = vweird.f32 %v403
        %vm411 = vmor %vm409, %vm410
        %v412 = vsel %vm411, %v403, %v408
        %v413 = vrsqrt.pop %v392
        %v414 = vmul.f32 %v413, %v392
        %v415 = vmul.f32 %v414, %v413
        %v416 = vmul.f32 0.5, %v415
        %v417 = vsub.f32 1.5, %v416
        %v418 = vmul.f32 %v413, %v417
        %vm419 = vweird.f32 %v392
        %vm420 = vweird.f32 %v413
        %vm421 = vmor %vm419, %vm420
        %v422 = vsel %vm421, %v413, %v418
        %v423 = vrsqrt.pop %v393
        %v424 = vmul.f32 %v423, %v393
        %v425 = vmul.f32 %v424, %v423
        %v426 = vmul.f32 0.5, %v425
        %v427 = vsub.f32 1.5, %v426
        %v428 = vmul.f32 %v423, %v427
        %vm429 = vweird.f32 %v393
        %vm430 = vweird.f32 %v423
        %vm431 = vmor %vm429, %vm430
        %v432 = vsel %vm431, %v423, %v428
        %v433 = vrsqrt.pop %v394
        %v434 = vmul.f32 %v433, %v394
        %v435 = vmul.f32 %v434, %v433
        %v436 = vmul.f32 0.5, %v435
        %v437 = vsub.f32 1.5, %v436
        %v438 = vmul.f32 %v433, %v437
        %vm439 = vweird.f32 %v394
        %vm440 = vweird.f32 %v433
        %vm441 = vmor %vm439, %vm440
        %v442 = vsel %vm441, %v433, %v438
        %v443 = vrsqrt.pop %v395
        %v444 = vmul.f32 %v443, %v395
        %v445 = vmul.f32 %v444, %v443
        %v446 = vmul.f32 0.5, %v445
        %v447 = vsub.f32 1.5, %v446
        %v448 = vmul.f32 %v443, %v447
        %vm449 = vweird.f32 %v395
        %vm450 = vweird.f32 %v443
        %vm451 = vmor %vm449, %vm450
        %v452 = vsel %vm451, %v443, %v448
        %v453 = vrsqrt.pop %v396
        %v454 = vmul.f32 %v453, %v396
        %v455 = vmul.f32 %v454, %v453
        %v456 = vmul.f32 0.5, %v455
        %v457 = vsub.f32 1.5, %v456
        %v458 = vmul.f32 %v453, %v457
        %vm459 = vweird.f32 %v396
        %vm460 = vweird.f32 %v453
        %vm461 = vmor %vm459, %vm460
        %v462 = vsel %vm461, %v453, %v458
        %v463 = vrsqrt.pop %v397
        %v464 = vmul.f32 %v463, %v397
        %v465 = vmul.f32 %v464, %v463
        %v466 = vmul.f32 0.5, %v465
        %v467 = vsub.f32 1.5, %v466
        %v468 = vmul.f32 %v463, %v467
        %vm469 = vweird.f32 %v397
        %vm470 = vweird.f32 %v463
        %vm471 = vmor %vm469, %vm470
        %v472 = vsel %vm471, %v463, %v468
        %v473 = vrsqrt.pop %v398
        %v474 = vmul.f32 %v473, %v398
        %v475 = vmul.f32 %v474, %v473
        %v476 = vmul.f32 0.5, %v475
        %v477 = vsub.f32 1.5, %v476
        %v478 = vmul.f32 %v473, %v477
        %vm479 = vweird.f32 %v398
        %vm480 = vweird.f32 %v473
        %vm481 = vmor %vm479, %vm480
        %v482 = vsel %vm481, %v473, %v478
        %v483 = vrsqrt.pop %v399
        %v484 = vmul.f32 %v483, %v399
        %v485 = vmul.f32 %v484, %v483
        %v486 = vmul.f32 0.5, %v485
        %v487 = vsub.f32 1.5, %v486
        %v488 = vmul.f32 %v483, %v487
        %vm489 = vweird.f32 %v399
        %vm490 = vweird.f32 %v483
        %vm491 = vmor %vm489, %vm490
        %v492 = vsel %vm491, %v483, %v488
        %v493 = vrsqrt.pop %v400
        %v494 = vmul.f32 %v493, %v400
        %v495 = vmul.f32 %v494, %v493
        %v496 = vmul.f32 0.5, %v495
        %v497 = vsub.f32 1.5, %v496
        %v498 = vmul.f32 %v493, %v497
        %vm499 = vweird.f32 %v400
        %vm500 = vweird.f32 %v493
        %vm501 = vmor %vm499, %vm500
        %v502 = vsel %vm501, %v493, %v498
        %v503 = vrsqrt.pop %v401
        %v504 = vmul.f32 %v503, %v401
        %v505 = vmul.f32 %v504, %v503
        %v506 = vmul.f32 0.5, %v505
        %v507 = vsub.f32 1.5, %v506
        %v508 = vmul.f32 %v503, %v507
        %vm509 = vweird.f32 %v401
        %vm510 = vweird.f32 %v503
        %vm511 = vmor %vm509, %vm510
        %v512 = vsel %vm511, %v503, %v508
        %v513 = vrsqrt.pop %v402
        %v514 = vmul.f32 %v513, %v402
        %v515 = vmul.f32 %v514, %v513
        %v516 = vmul.f32 0.5, %v515
        %v517 = vsub.f32 1.5, %v516
        %v518 = vmul.f32 %v513, %v517
        %vm519 = vweird.f32 %v402
        %vm520 = vweird.f32 %v513
        %vm521 = vmor %vm519, %vm520
        %v522 = vsel %vm521, %v513, %v518
        %v523 = vsub.f32 %v211, %v331
        %v524 = vsub.f32 %v212, %v331
        %v525 = vsub.f32 %v213, %v332
        %v526 = vsub.f32 %v214, %v332
        %v527 = vsub.f32 %v215, %v333
        %v528 = vsub.f32 %v216, %v333
        %v529 = vsub.f32 %v217, %v334
        %v530 = vsub.f32 %v218, %v334
        %v531 = vsub.f32 %v219, %v335
        %v532 = vsub.f32 %v220, %v335
        %v533 = vsub.f32 %v221, %v336
        %v534 = vsub.f32 %v222, %v336
        %v535 = vsub.f32 %v223, %v337
        %v536 = vsub.f32 %v224, %v337
        %v537 = vsub.f32 %v225, %v338
        %v538 = vsub.f32 %v226, %v338
        %v539 = vsub.f32 %v227, %v339
        %v540 = vsub.f32 %v228, %v339
        %v541 = vsub.f32 %v229, %v340
        %v542 = vsub.f32 %v230, %v340
        %v543 = vsub.f32 %v231, %v341
        %v544 = vsub.f32 %v232, %v341
        %v545 = vsub.f32 %v233, %v342
        %v546 = vsub.f32 %v234, %v342
        %v547 = vmul.f32 %v523, %v412
        %v548 = vmul.f32 %v524, %v412
        %v549 = vmul.f32 %v525, %v422
        %v550 = vmul.f32 %v526, %v422
        %v551 = vmul.f32 %v527, %v432
        %v552 = vmul.f32 %v528, %v432
        %v553 = vmul.f32 %v529, %v442
        %v554 = vmul.f32 %v530, %v442
        %v555 = vmul.f32 %v531, %v452
        %v556 = vmul.f32 %v532, %v452
        %v557 = vmul.f32 %v533, %v462
        %v558 = vmul.f32 %v534, %v462
        %v559 = vmul.f32 %v535, %v472
        %v560 = vmul.f32 %v536, %v472
        %v561 = vmul.f32 %v537, %v482
        %v562 = vmul.f32 %v538, %v482
        %v563 = vmul.f32 %v539, %v492
        %v564 = vmul.f32 %v540, %v492
        %v565 = vmul.f32 %v541, %v502
        %v566 = vmul.f32 %v542, %v502
        %v567 = vmul.f32 %v543, %v512
        %v568 = vmul.f32 %v544, %v512
        %v569 = vmul.f32 %v545, %v522
        %v570 = vmul.f32 %v546, %v522
        %v571 = vld [vmem:[#allocation5] sm:$0xff]
        %v572 = vld [vmem:[#allocation5 + $0x8] sm:$0xff]
        %v573 = vld [vmem:[#allocation5 + $0x10] sm:$0xff]
        %v574 = vld [vmem:[#allocation5 + $0x18] sm:$0xff]
        %v575 = vld [vmem:[#allocation5 + $0x20] sm:$0xff]
        %v576 = vld [vmem:[#allocation5 + $0x28] sm:$0xff]
        %v577 = vld [vmem:[#allocation5 + $0x30] sm:$0xff]
        %v578 = vld [vmem:[#allocation5 + $0x38] sm:$0xff]
        %v579 = vld [vmem:[#allocation5 + $0x40] sm:$0xff]
        %v580 = vld [vmem:[#allocation5 + $0x48] sm:$0xff]
        %v581 = vld [vmem:[#allocation5 + $0x50] sm:$0xff]
        %v582 = vld [vmem:[#allocation5 + $0x58] sm:$0xff]
        %v583 = vld [vmem:[#allocation5 + $0x60] sm:$0xff]
        %v584 = vld [vmem:[#allocation5 + $0x68] sm:$0xff]
        %v585 = vld [vmem:[#allocation5 + $0x70] sm:$0xff]
        %v586 = vld [vmem:[#allocation5 + $0x78] sm:$0xff]
        %v587 = vld [vmem:[#allocation5 + $0x80] sm:$0xff]
        %v588 = vld [vmem:[#allocation5 + $0x88] sm:$0xff]
        %v589 = vld [vmem:[#allocation5 + $0x90] sm:$0xff]
        %v590 = vld [vmem:[#allocation5 + $0x98] sm:$0xff]
        %v591 = vld [vmem:[#allocation5 + $0xa0] sm:$0xff]
        %v592 = vld [vmem:[#allocation5 + $0xa8] sm:$0xff]
        %v593 = vld [vmem:[#allocation5 + $0xb0] sm:$0xff]
        %v594 = vld [vmem:[#allocation5 + $0xb8] sm:$0xff]
        %v595 = vld [vmem:[#allocation5 + $0xc0] sm:$0xff]
        %v596 = vld [vmem:[#allocation5 + $0xc8] sm:$0xff]
        %v597 = vld [vmem:[#allocation5 + $0xd0] sm:$0xff]
        %v598 = vld [vmem:[#allocation5 + $0xd8] sm:$0xff]
        %v599 = vld [vmem:[#allocation5 + $0xe0] sm:$0xff]
        %v600 = vld [vmem:[#allocation5 + $0xe8] sm:$0xff]
        %v601 = vld [vmem:[#allocation5 + $0xf0] sm:$0xff]
        %v602 = vld [vmem:[#allocation5 + $0xf8] sm:$0xff]
        %v603 = vld [vmem:[%s2] sm:$0x1]
        %v605 = vperm.slane %v603, 0
        %607 = vmatpush.msra.mxu0 %v586
        %608 = vmatpush.msra.mxu0 %v585
        %609 = vmatpush.msra.mxu0 %v584
        %610 = vmatpush.msra.mxu0 %v583
        %611 = vmatpush.msra.mxu0 %v582
        %612 = vmatpush.msra.mxu0 %v581
        %613 = vmatpush.msra.mxu0 %v580
        %614 = vmatpush.msra.mxu0 %v579
        %615 = vmatpush.msra.mxu0 %v578
        %616 = vmatpush.msra.mxu0 %v577
        %617 = vmatpush.msra.mxu0 %v576
        %618 = vmatpush.msra.mxu0 %v575
        %619 = vmatpush.msra.mxu0 %v574
        %620 = vmatpush.msra.mxu0 %v573
        %621 = vmatpush.msra.mxu0 %v572
        %622 = vmatpush.msra.mxu0 %v571
        %623 = vmatmul.f32.gmra.mxu0 %v547
        %v624 = vpop.f32.mrf.mxu0
        %v625 = vadd.f32 %v605, %v624
        %626 = vmatmul.f32.gmra.mxu0 %v549
        %v627 = vpop.f32.mrf.mxu0
        %v628 = vadd.f32 %v605, %v627
        %629 = vmatmul.f32.gmra.mxu0 %v551
        %v630 = vpop.f32.mrf.mxu0
        %v631 = vadd.f32 %v605, %v630
        %632 = vmatmul.f32.gmra.mxu0 %v553
        %v633 = vpop.f32.mrf.mxu0
        %v634 = vadd.f32 %v605, %v633
        %635 = vmatmul.f32.gmra.mxu0 %v555
        %v636 = vpop.f32.mrf.mxu0
        %v637 = vadd.f32 %v605, %v636
        %638 = vmatmul.f32.gmra.mxu0 %v557
        %v639 = vpop.f32.mrf.mxu0
        %v640 = vadd.f32 %v605, %v639
        %641 = vmatmul.f32.gmra.mxu0 %v559
        %v642 = vpop.f32.mrf.mxu0
        %v643 = vadd.f32 %v605, %v642
        %644 = vmatmul.f32.gmra.mxu0 %v561
        %v645 = vpop.f32.mrf.mxu0
        %v646 = vadd.f32 %v605, %v645
        %647 = vmatmul.f32.gmra.mxu0 %v563
        %v648 = vpop.f32.mrf.mxu0
        %v649 = vadd.f32 %v605, %v648
        %650 = vmatmul.f32.gmra.mxu0 %v565
        %v651 = vpop.f32.mrf.mxu0
        %v652 = vadd.f32 %v605, %v651
        %653 = vmatmul.f32.gmra.mxu0 %v567
        %v654 = vpop.f32.mrf.mxu0
        %v655 = vadd.f32 %v605, %v654
        %656 = vmatmul.f32.gmra.mxu0 %v569
        %v657 = vpop.f32.mrf.mxu0
        %v658 = vadd.f32 %v605, %v657
        %659 = vdwg.mxu0
        %660 = vmatpush.msra.mxu0 %v602
        %661 = vmatpush.msra.mxu0 %v601
        %662 = vmatpush.msra.mxu0 %v600
        %663 = vmatpush.msra.mxu0 %v599
        %664 = vmatpush.msra.mxu0 %v598
        %665 = vmatpush.msra.mxu0 %v597
        %666 = vmatpush.msra.mxu0 %v596
        %667 = vmatpush.msra.mxu0 %v595
        %668 = vmatpush.msra.mxu0 %v594
        %669 = vmatpush.msra.mxu0 %v593
        %670 = vmatpush.msra.mxu0 %v592
        %671 = vmatpush.msra.mxu0 %v591
        %672 = vmatpush.msra.mxu0 %v590
        %673 = vmatpush.msra.mxu0 %v589
        %674 = vmatpush.msra.mxu0 %v588
        %675 = vmatpush.msra.mxu0 %v587
        %676 = vmatmul.f32.gmra.mxu0 %v548
        %v677 = vpop.f32.mrf.mxu0
        %v678 = vadd.f32 %v625, %v677
        %679 = vmatmul.f32.gmra.mxu0 %v550
        %v680 = vpop.f32.mrf.mxu0
        %v681 = vadd.f32 %v628, %v680
        %682 = vmatmul.f32.gmra.mxu0 %v552
        %v683 = vpop.f32.mrf.mxu0
        %v684 = vadd.f32 %v631, %v683
        %685 = vmatmul.f32.gmra.mxu0 %v554
        %v686 = vpop.f32.mrf.mxu0
        %v687 = vadd.f32 %v634, %v686
        %688 = vmatmul.f32.gmra.mxu0 %v556
        %v689 = vpop.f32.mrf.mxu0
        %v690 = vadd.f32 %v637, %v689
        %691 = vmatmul.f32.gmra.mxu0 %v558
        %v692 = vpop.f32.mrf.mxu0
        %v693 = vadd.f32 %v640, %v692
        %694 = vmatmul.f32.gmra.mxu0 %v560
        %v695 = vpop.f32.mrf.mxu0
        %v696 = vadd.f32 %v643, %v695
        %697 = vmatmul.f32.gmra.mxu0 %v562
        %v698 = vpop.f32.mrf.mxu0
        %v699 = vadd.f32 %v646, %v698
        %700 = vmatmul.f32.gmra.mxu0 %v564
        %v701 = vpop.f32.mrf.mxu0
        %v702 = vadd.f32 %v649, %v701
        %703 = vmatmul.f32.gmra.mxu0 %v566
        %v704 = vpop.f32.mrf.mxu0
        %v705 = vadd.f32 %v652, %v704
        %706 = vmatmul.f32.gmra.mxu0 %v568
        %v707 = vpop.f32.mrf.mxu0
        %v708 = vadd.f32 %v655, %v707
        %709 = vmatmul.f32.gmra.mxu0 %v570
        %v710 = vpop.f32.mrf.mxu0
        %v711 = vadd.f32 %v658, %v710
        %712 = vdwg.mxu0
        %713 = vst [vmem:[%s208] sm:$0xff] %v678
        %714 = vst [vmem:[%s208 + $0x8] sm:$0xff] %v681
        %715 = vst [vmem:[%s208 + $0x10] sm:$0xff] %v684
        %716 = vst [vmem:[%s208 + $0x18] sm:$0xff] %v687
        %717 = vst [vmem:[%s208 + $0x20] sm:$0xff] %v690
        %718 = vst [vmem:[%s208 + $0x28] sm:$0xff] %v693
        %719 = vst [vmem:[%s208 + $0x30] sm:$0xff] %v696
        %720 = vst [vmem:[%s208 + $0x38] sm:$0xff] %v699
        %721 = vst [vmem:[%s208 + $0x40] sm:$0xff] %v702
        %722 = vst [vmem:[%s208 + $0x48] sm:$0xff] %v705
        %723 = vst [vmem:[%s208 + $0x50] sm:$0xff] %v708
        %724 = vst [vmem:[%s208 + $0x58] sm:$0xff] %v711
        %s725 = sand.u32 %s97, 1
        %s726 = scalar_lea.sflag [#allocation4], %s725
        %s727 = sand.u32 %s97, 1
        %s728 = smul.addr %s727, 96
        %s729 = scalar_lea.vmem [#allocation7], %s728
        // Predicated region
        $region41: #{tpu_custom_call.1} parent=31 // pred_check
          %p730 = pneg %p107
        $region42: #{tpu_custom_call.1} parent=31 // pred_check_branch
          %732 = sbr.rel (%p730) target = $region44
        $region43: #{tpu_custom_call.1} parent=31 // pred_region
          %s733 = smul.u32 12, %s21
          %735 = vsyncadd %s726, 0
          %s736 = smul.addr %s733, 8
          %s737 = scalar_lea.hbm %s3, %s736
          %s738 = sshll.u32 %s729, 4
          %s739 = int_to_ptr.vmem [resolvable:$true] %s738
          %s740 = sshll.u32 %s737, 4
          %s741 = int_to_ptr.hbm [resolvable:$true] %s740
          %746 = dma.vmem_to_hbm [thread:$0]  %s739, 1536, %s741, %s726, 128, 128, 8
        $region44: #{tpu_custom_call.1} parent=31 // pred_fallthru
          _
      $region32: #{tpu_custom_call.1} parent=5 // pred_fallthru
        _
      %p747 = scmp.le.s32.totalorder 2, %s16
      // Predicated region
      $region45: #{tpu_custom_call.1} parent=5 // pred_check
        %p748 = pneg %p747
      $region46: #{tpu_custom_call.1} parent=5 // pred_check_branch
        %750 = sbr.rel (%p748) target = $region48
      $region47: #{tpu_custom_call.1} parent=5 // pred_region
        %s751 = ssub.s32 %s16, 2
        // Predicated region
        $region49: #{tpu_custom_call.1} parent=47 // pred_check
          %p752 = pneg %p113
        $region50: #{tpu_custom_call.1} parent=47 // pred_check_branch
          %754 = sbr.rel (%p752) target = $region52
        $region51: #{tpu_custom_call.1} parent=47 // pred_region
          %s755 = sand.u32 %s98, 1
          %s756 = scalar_lea.sflag [#allocation4], %s755
          %s757 = sand.u32 %s98, 1
          %s758 = smul.addr %s757, 96
          %s759 = scalar_lea.vmem [#allocation7], %s758
          %761 = dma.done %s756, 1536
        $region52: #{tpu_custom_call.1} parent=47 // pred_fallthru
          _
      $region48: #{tpu_custom_call.1} parent=5 // pred_fallthru
        _
    $region6: #{tpu_custom_call.1} parent=1 // loop_footer
      %s20 = sadd.s32 1, %s16
    $region7: #{tpu_custom_call.1} parent=1 // loop_footer_branch
      %15 = sbr.rel target = $region3
    $region8: #{tpu_custom_call.1} parent=1 // loop_exit
      _
    %762 = vsyncpa [#allocation3], 1
    %s763 = scalar_lea.sflag [#allocation3], 1
    %764 = vsyncpa %s763, 1
    %765 = vsyncpa [#allocation6], 1
    %766 = vsyncpa [#allocation4], 1
    %s767 = scalar_lea.sflag [#allocation4], 1
    %768 = vsyncpa %s767, 1

</llo_original>
